<compile_context>
chip_gen: v6e
topology: v6e:2x2x1
jax: 0.10.0
libtpu: 0.0.40
codegen_flags: <defaults>
</compile_context>

<pallas_src>
import jax
import jax.numpy as jnp
from jax import lax
from jax.experimental import pallas as pl
from jax.experimental.pallas import tpu as pltpu


def _partial_matvec_kernel(x_ref, w_ref, o_ref):
    """One reduction step of the fc GEMV on the VPU (no MXU).

    x_ref: (B, tk)   activation tile (any float dtype)
    w_ref: (C, tk)   weight tile, native PyTorch Linear layout (lane-dense),
                     typically bf16 in HBM
    o_ref: (C, B)    f32 partial-logit block for the current F-split; resident
                     across the reduction axis and used directly as the
                     accumulator (no VMEM scratch, no bias, no softmax here —
                     those happen in the combine outside the kernel).
    """
    k = pl.program_id(1)  # reduction axis (innermost)

    @pl.when(k == 0)
    def _():
        o_ref[...] = jnp.zeros_like(o_ref)

    # Widen the weight tile once per step (v5e VPU has no native bf16 math);
    # hoisted out of the per-row loop so the load+convert is not duplicated.
    w = w_ref[...].astype(jnp.float32)               # (C, tk)

    B = x_ref.shape[0]
    cols = []
    for b in range(B):                               # B is tiny & static -> unrolled
        x_row = x_ref[b:b + 1, :].astype(jnp.float32)        # (1, tk), sublane-broadcast
        # VPU multiply + tree-add over lanes, final cross-lane reduce on the XLU.
        cols.append(jnp.sum(x_row * w, axis=-1, keepdims=True))  # (C, 1)
    o_ref[...] += jnp.concatenate(cols, axis=1)      # (C, B)


def _choose_split_and_tile(F, *, max_tk=40960, num_splits=2):
    """Pick (num_splits, tk): split F across `num_splits` parallel grid slots
    (2 -> one per v7x TensorCore) and choose the largest 128-multiple divisor
    of each split <= max_tk, so the grid has only a handful of big steps
    (e.g. F=153600 -> 2 splits x 2 steps of tk=38400)."""
    assert F % 128 == 0, "flattened feature dim must be a multiple of 128"
    if num_splits < 1 or F % (num_splits * 128) != 0:
        num_splits = 1
    f_split = F // num_splits
    cap = min(f_split, max_tk)
    tk = 128
    t = 128
    while t <= cap:
        if f_split % t == 0:
            tk = t
        t += 128
    return num_splits, tk


def fc_partial_logits(x_flat, w, *, max_tk=40960, num_splits=2):
    """Per-split partial logits of x_flat @ w.T (no bias), shape (S, C, B) f32.

    x_flat: (B, F); w: (C, F) in native PyTorch Linear layout (any float dtype,
    typically bf16). Accumulation is always f32.
    """
    B, F = x_flat.shape
    C, F2 = w.shape
    assert F == F2

    num_splits, tk = _choose_split_and_tile(F, max_tk=max_tk, num_splits=num_splits)
    kps = (F // num_splits) // tk     # reduction steps per split

    x_bytes = jnp.dtype(x_flat.dtype).itemsize
    w_bytes = jnp.dtype(w.dtype).itemsize

    # Double-buffered input tiles + generous headroom for internal scratch;
    # stays far below every generation's scoped-VMEM budget (incl. v5e 16 MiB).
    vmem_limit = int(2 * tk * (B * x_bytes + C * w_bytes) + (8 << 20))

    cost = pl.CostEstimate(
        flops=2 * B * C * F,
        transcendentals=0,
        bytes_accessed=int(B * F * x_bytes + C * F * w_bytes + num_splits * B * C * 4),
    )

    return pl.pallas_call(
        _partial_matvec_kernel,
        out_shape=jax.ShapeDtypeStruct((num_splits, C, B), jnp.float32),
        grid_spec=pltpu.PrefetchScalarGridSpec(
            num_scalar_prefetch=0,
            grid=(num_splits, kps),   # ("parallel" F-split, "arbitrary" reduction)
            in_specs=[
                pl.BlockSpec((B, tk), lambda s, k: (0, s * kps + k)),  # activations
                pl.BlockSpec((C, tk), lambda s, k: (0, s * kps + k)),  # weight (lane-dense)
            ],
            out_specs=pl.BlockSpec((None, C, B), lambda s, k: (s, 0, 0)),
        ),
        compiler_params=pltpu.CompilerParams(
            dimension_semantics=("parallel", "arbitrary"),
            vmem_limit_bytes=vmem_limit,
        ),
        cost_estimate=cost,
    )(x_flat, w)


def fc_softmax(x_flat, w, b, **kwargs):
    """softmax(x_flat @ w.T + b). Partial logits come from the Pallas kernel;
    the (num_splits*B*C <= 16)-float combine (sum partials + bias + softmax)
    runs in plain JAX — it must live outside the kernel for the multi-core
    F-split to be correct, and it is negligible work."""
    partials = fc_partial_logits(x_flat, w, **kwargs)        # (S, C, B) f32
    logits = jnp.sum(partials, axis=0).T + b[None, :].astype(jnp.float32)  # (B, C)
    return jax.nn.softmax(logits, axis=-1)


def language_and_vision_concat_forward(last_hidden_state, fc_weight, fc_bias,
                                       label=None, loss_fn=None,
                                       weight_dtype=jnp.bfloat16):
    """Mirrors LanguageAndVisionConcat.forward from the fc layer onward.

    last_hidden_state: (B, S, H)           — stands in for the VisualBERT output
    fc_weight:         (num_classes, S*H)  — native PyTorch Linear layout
    fc_bias:           (num_classes,)
    Returns (pred, loss); loss is None when label is None.  The weight is
    streamed as bf16 (cast here for the demo; in deployment store it bf16 once
    at load time), with f32 accumulation inside the kernel.
    """
    B = last_hidden_state.shape[0]
    flat = last_hidden_state.reshape(B, -1)          # torch.flatten(x, 1, -1)
    w = fc_weight if weight_dtype is None else fc_weight.astype(weight_dtype)
    pred = fc_softmax(flat, w, fc_bias)
    # NB: softmax-before-loss ordering faithfully mirrors the original module.
    loss = loss_fn(pred, label) if label is not None else label
    return pred, loss


if __name__ == "__main__":
    # Small, shape-consistent stand-ins for the real module:
    #   real:  seq*hidden = 153600 -> fc Linear(153600, num_classes)
    #   here:  B=2, S=8, H=32 -> F=256, num_classes=4
    B, S, H = 2, 8, 32
    F = S * H
    NUM_CLASSES = 4

    key = jax.random.PRNGKey(0)
    k_hidden, k_w, k_b = jax.random.split(key, 3)

    # Deterministic "last_hidden_state" (stands in for VisualBERT output).
    last_hidden_state = jax.random.normal(k_hidden, (B, S, H), dtype=jnp.float32)

    # Deterministic fc parameters, PyTorch Linear layout (out_features, in_features).
    fc_weight = 0.02 * jax.random.normal(k_w, (NUM_CLASSES, F), dtype=jnp.float32)
    fc_bias = 0.01 * jax.random.normal(k_b, (NUM_CLASSES,), dtype=jnp.float32)

    pred, loss = language_and_vision_concat_forward(
        last_hidden_state, fc_weight, fc_bias, label=None
    )
    pred = jax.block_until_ready(pred)

    # Reference in plain JAX, using the same bf16-quantized weight the kernel
    # streams (f32 accumulation in both paths).
    w_q = fc_weight.astype(jnp.bfloat16).astype(jnp.float32)
    logits_ref = jnp.dot(last_hidden_state.reshape(B, -1), w_q.T,
                         precision=lax.Precision.HIGHEST) + fc_bias
    pred_ref = jax.nn.softmax(logits_ref, axis=-1)

    assert pred.shape == (B, NUM_CLASSES)
    assert loss is None
    assert jnp.allclose(pred, pred_ref, atol=1e-5, rtol=1e-5), (pred, pred_ref)

    print("KERNEL_OK")
</pallas_src>

<mosaic_0001>
module attributes {stable_mosaic.version = 11 : i64} {
  func.func @_partial_matvec_kernel(%arg0: i32, %arg1: i32, %arg2: memref<2x128xf32, #tpu.memory_space<vmem>>, %arg3: memref<4x128xbf16, #tpu.memory_space<vmem>>, %arg4: memref<1x4x2xf32, #tpu.memory_space<vmem>>) attributes {dimension_semantics = [#tpu.dimension_semantics<parallel>, #tpu.dimension_semantics<arbitrary>], iteration_bounds = array<i64: 2, 1>, scalar_prefetch = 0 : i64, scratch_operands = 0 : i64, tpu.core_type = #tpu.core_type<tc>, window_params = [{transform_indices = @transform_0, window_bounds = array<i64: 2, 128>}, {transform_indices = @transform_1, window_bounds = array<i64: 4, 128>}, {transform_indices = @transform_2, window_bounds = array<i64: 1, 4, 2>}]} {
    %c0_i32 = arith.constant 0 : i32
    %0 = arith.cmpi eq, %arg1, %c0_i32 : i32
    %1 = arith.extui %0 : i1 to i32
    %c0_i32_0 = arith.constant 0 : i32
    %2 = arith.cmpi ne, %1, %c0_i32_0 : i32
    scf.if %2 {
      %cst_12 = arith.constant 0.000000e+00 : f32
      %22 = vector.broadcast %cst_12 : f32 to vector<4x2xf32>
      %c0_13 = arith.constant 0 : index
      %c0_14 = arith.constant 0 : index
      %c0_15 = arith.constant 0 : index
      %23 = vector.load %arg4[%c0_13, %c0_14, %c0_15] : memref<1x4x2xf32, #tpu.memory_space<vmem>>, vector<1x4x2xf32>
      %24 = vector.shape_cast %23 : vector<1x4x2xf32> to vector<4x2xf32>
      %25 = vector.shape_cast %22 : vector<4x2xf32> to vector<1x4x2xf32>
      tpu.vector_store %arg4[%c0_13, %c0_14, %c0_15], %25 {strides = array<i32>} : memref<1x4x2xf32, #tpu.memory_space<vmem>>, vector<1x4x2xf32>,
    } else {
    }
    %c0 = arith.constant 0 : index
    %c0_1 = arith.constant 0 : index
    %3 = vector.load %arg3[%c0, %c0_1] : memref<4x128xbf16, #tpu.memory_space<vmem>>, vector<4x128xbf16>
    %4 = arith.extf %3 : vector<4x128xbf16> to vector<4x128xf32>
    %c0_2 = arith.constant 0 : index
    %c0_3 = arith.constant 0 : index
    %5 = vector.load %arg2[%c0_2, %c0_3] : memref<2x128xf32, #tpu.memory_space<vmem>>, vector<1x128xf32>
    %6 = vector.broadcast %5 : vector<1x128xf32> to vector<4x128xf32>
    %7 = arith.mulf %6, %4 : vector<4x128xf32>
    %cst = arith.constant dense<0.000000e+00> : vector<4xf32>
    %8 = vector.multi_reduction <add>, %7, %cst [1] : vector<4x128xf32> to vector<4xf32>
    %9 = vector.shape_cast %8 : vector<4xf32> to vector<4x1xf32>
    %c1 = arith.constant 1 : index
    %c0_4 = arith.constant 0 : index
    %10 = vector.load %arg2[%c1, %c0_4] : memref<2x128xf32, #tpu.memory_space<vmem>>, vector<1x128xf32>
    %11 = vector.broadcast %10 : vector<1x128xf32> to vector<4x128xf32>
    %12 = arith.mulf %11, %4 : vector<4x128xf32>
    %cst_5 = arith.constant dense<0.000000e+00> : vector<4xf32>
    %13 = vector.multi_reduction <add>, %12, %cst_5 [1] : vector<4x128xf32> to vector<4xf32>
    %14 = vector.shape_cast %13 : vector<4xf32> to vector<4x1xf32>
    %c0_6 = arith.constant 0 : index
    %c0_7 = arith.constant 0 : index
    %c0_8 = arith.constant 0 : index
    %15 = vector.load %arg4[%c0_6, %c0_7, %c0_8] : memref<1x4x2xf32, #tpu.memory_space<vmem>>, vector<1x4x2xf32>
    %16 = vector.shape_cast %15 : vector<1x4x2xf32> to vector<4x2xf32>
    %17 = tpu.concatenate %9, %14 in 1 : vector<4x1xf32>, vector<4x1xf32> -> vector<4x2xf32>
    %18 = arith.addf %16, %17 : vector<4x2xf32>
    %c0_9 = arith.constant 0 : index
    %c0_10 = arith.constant 0 : index
    %c0_11 = arith.constant 0 : index
    %19 = vector.load %arg4[%c0_9, %c0_10, %c0_11] : memref<1x4x2xf32, #tpu.memory_space<vmem>>, vector<1x4x2xf32>
    %20 = vector.shape_cast %19 : vector<1x4x2xf32> to vector<4x2xf32>
    %21 = vector.shape_cast %18 : vector<4x2xf32> to vector<1x4x2xf32>
    tpu.vector_store %arg4[%c0_9, %c0_10, %c0_11], %21 {strides = array<i32>} : memref<1x4x2xf32, #tpu.memory_space<vmem>>, vector<1x4x2xf32>,
    return
  }
  func.func @transform_0(%arg0: i32, %arg1: i32) -> (i32, i32) {
    %c1_i32 = arith.constant 1 : i32
    %0 = arith.muli %arg0, %c1_i32 : i32
    %1 = arith.addi %0, %arg1 : i32
    %c0_i32 = arith.constant 0 : i32
    %c0_i32_0 = arith.constant 0 : i32
    return %c0_i32, %1 : i32, i32
  }
  func.func @transform_1(%arg0: i32, %arg1: i32) -> (i32, i32) {
    %c1_i32 = arith.constant 1 : i32
    %0 = arith.muli %arg0, %c1_i32 : i32
    %1 = arith.addi %0, %arg1 : i32
    %c0_i32 = arith.constant 0 : i32
    %c0_i32_0 = arith.constant 0 : i32
    return %c0_i32, %1 : i32, i32
  }
  func.func @transform_2(%arg0: i32, %arg1: i32) -> (i32, i32, i32) {
    %c0_i32 = arith.constant 0 : i32
    %c0_i32_0 = arith.constant 0 : i32
    %c0_i32_1 = arith.constant 0 : i32
    return %arg0, %c0_i32, %c0_i32_0 : i32, i32, i32
  }
}

</mosaic_0001>

<llo_original>
// kernel: tpu_custom_call.1
$region0: #{tpu_custom_call.1}
  #allocation0 [shape = 'u32[]', space=smem, size = 0x4, offset = 0x4, fixed_abs, tag = 'smem constant byte address 0x4 - core index']
  #allocation1 [shape = 'u32[144,128]{1,0:T(1,128)}', space=vmem, size = 0x12000, scoped, tag = 'internal scratch']
  %s0 = inlined_call_operand.hbm [shape: f32[2,256], index: 0, kind: input, shape index: {}]
  %s1 = inlined_call_operand.hbm [shape: bf16[4,256], index: 1, kind: input, shape index: {}]
  %s2 = inlined_call_operand.vmem [shape: f32[2,4,2], index: 2, kind: output, shape index: {}]
  %s3 = sld [smem:[#allocation0]]
  $region53: #{tpu_custom_call.1} parent=0
    _
  %s5 = ssub.s32 1, %s3
  %s6 = scalar_select 0, %s5, %s3
  $region1: #{tpu_custom_call.1} parent=0
    #allocation2 [shape = 'u8[2048]{0}', space=vmem, size = 0x800, scoped, tag = 'input window, operand 0']
    #allocation3 [shape = 's32[2]{0}', space=sflag, size = 0x8, scoped, tag = 'scoped memory for tpu_custom_call.1']
    #allocation4 [shape = 'u8[2048]{0}', space=vmem, size = 0x800, scoped, tag = 'input window, operand 1']
    #allocation5 [shape = 's32[2]{0}', space=sflag, size = 0x8, scoped, tag = 'scoped memory for tpu_custom_call.1']
    %7 = vsyncpa [#allocation3], 0
    %s8 = scalar_lea.sflag [#allocation3], 1
    %9 = vsyncpa %s8, 0
    %10 = vsyncpa [#allocation5], 0
    %s11 = scalar_lea.sflag [#allocation5], 1
    %12 = vsyncpa %s11, 0
    loop: start=0, step=1, limit=4
    $region2: #{tpu_custom_call.1} parent=1 // loop_pre_header
      _
    $region3: #{tpu_custom_call.1} parent=1 // loop_header
      %s14 = sphi 0, %s18
      %p15 = scmp.ge.s32.totalorder %s14, 4
      %s21 = sphi 0, %s33
      %s22 = sphi 0, %s29
      %s23 = sphi 0, %s21
      %s24 = sphi 0, %s22
      %s25 = sphi 0, %s23
      %s26 = sphi 0, %s24
      %s38 = sphi 0, %s40
      %s41 = sphi 0, %s38
      %s42 = sphi 0, %s41
      %s58 = sphi 0, %s42
      %s66 = sphi 0, %s68
      %s69 = sphi 0, %s66
      %s70 = sphi 0, %s69
      %s86 = sphi 0, %s70
      %s92 = sphi 0, %s94
      %s95 = sphi 0, %s92
      %s96 = sphi 0, %s95
      %s112 = sphi 0, %s96
    $region4: #{tpu_custom_call.1} parent=1 // loop_header_branch
      %17 = sbr.rel (%p15) target = $region8
    $region5: #{tpu_custom_call.1} parent=1 // loop_body
      %s19 = ssub.s32 %s14, 1
      %s20 = ssub.s32 %s14, 2
      %s27 = sadd.s32 1, %s22
      %p28 = scmp.ge.s32.totalorder %s27, 1
      %s29 = scalar_select %p28, 0, %s27
      %s30 = sadd.s32 1, %s21
      %s31 = scalar_select %p28, %s30, %s21
      %p32 = scmp.ge.s32.totalorder %s31, 2
      %s33 = scalar_select %p32, 0, %s31
      %s34 = sadd.s32 %s21, %s22
      %s35 = sadd.s32 %s33, %s29
      %s36 = ssub.s32 %s34, %s35
      %p37 = scmp.eq.s32.totalorder %s36, 0
      %s39 = sadd.s32 %s38, 1
      %s40 = scalar_select %p37, %s38, %s39
      %p43 = pneg %p37
      %p44 = scmp.eq.s32.totalorder %s14, 1
      %p45 = por %p43, %p44
      %p46 = scmp.ne.s32.totalorder %s38, %s41
      %p47 = scmp.eq.s32.totalorder %s14, 0
      %p48 = por %p46, %p47
      %p49 = scmp.ne.s32.totalorder %s38, %s41
      %p50 = scmp.eq.s32.totalorder %s19, 1
      %p51 = por %p49, %p50
      %p52 = scmp.ne.s32.totalorder %s41, %s42
      %p53 = scmp.eq.s32.totalorder %s19, 0
      %p54 = por %p52, %p53
      %p55 = scmp.ne.s32.totalorder %s41, %s42
      %p56 = scmp.eq.s32.totalorder %s20, 1
      %p57 = por %p55, %p56
      %p59 = scmp.ne.s32.totalorder %s42, %s58
      %p60 = scmp.eq.s32.totalorder %s20, 0
      %p61 = por %p59, %p60
      %s62 = sadd.s32 %s21, %s22
      %s63 = sadd.s32 %s33, %s29
      %s64 = ssub.s32 %s62, %s63
      %p65 = scmp.eq.s32.totalorder %s64, 0
      %s67 = sadd.s32 %s66, 1
      %s68 = scalar_select %p65, %s66, %s67
      %p71 = pneg %p65
      %p72 = scmp.eq.s32.totalorder %s14, 1
      %p73 = por %p71, %p72
      %p74 = scmp.ne.s32.totalorder %s66, %s69
      %p75 = scmp.eq.s32.totalorder %s14, 0
      %p76 = por %p74, %p75
      %p77 = scmp.ne.s32.totalorder %s66, %s69
      %p78 = scmp.eq.s32.totalorder %s19, 1
      %p79 = por %p77, %p78
      %p80 = scmp.ne.s32.totalorder %s69, %s70
      %p81 = scmp.eq.s32.totalorder %s19, 0
      %p82 = por %p80, %p81
      %p83 = scmp.ne.s32.totalorder %s69, %s70
      %p84 = scmp.eq.s32.totalorder %s20, 1
      %p85 = por %p83, %p84
      %p87 = scmp.ne.s32.totalorder %s70, %s86
      %p88 = scmp.eq.s32.totalorder %s20, 0
      %p89 = por %p87, %p88
      %s90 = ssub.s32 %s21, %s33
      %p91 = scmp.eq.s32.totalorder %s90, 0
      %s93 = sadd.s32 %s92, 1
      %s94 = scalar_select %p91, %s92, %s93
      %p97 = pneg %p91
      %p98 = scmp.eq.s32.totalorder %s14, 1
      %p99 = por %p97, %p98
      %p100 = scmp.ne.s32.totalorder %s92, %s95
      %p101 = scmp.eq.s32.totalorder %s14, 0
      %p102 = por %p100, %p101
      %p103 = scmp.ne.s32.totalorder %s92, %s95
      %p104 = scmp.eq.s32.totalorder %s19, 1
      %p105 = por %p103, %p104
      %p106 = scmp.ne.s32.totalorder %s95, %s96
      %p107 = scmp.eq.s32.totalorder %s19, 0
      %p108 = por %p106, %p107
      %p109 = scmp.ne.s32.totalorder %s95, %s96
      %p110 = scmp.eq.s32.totalorder %s20, 1
      %p111 = por %p109, %p110
      %p113 = scmp.ne.s32.totalorder %s96, %s112
      %p114 = scmp.eq.s32.totalorder %s20, 0
      %p115 = por %p113, %p114
      %p116 = scmp.le.s32.totalorder 1, %s14
      %p117 = scmp.lt.s32.totalorder %s14, 3
      %p118 = pnand %p116, %p117
      %p119 = pneg %p118
      // Predicated region
      $region9: #{tpu_custom_call.1} parent=5 // pred_check
        _
      $region10: #{tpu_custom_call.1} parent=5 // pred_check_branch
        %121 = sbr.rel (%p118) target = $region12
      $region11: #{tpu_custom_call.1} parent=5 // pred_region
        %s122 = ssub.s32 %s14, 1
      $region12: #{tpu_custom_call.1} parent=5 // pred_fallthru
        _
      %p123 = scmp.lt.s32.totalorder %s14, 2
      // Predicated region
      $region13: #{tpu_custom_call.1} parent=5 // pred_check
        %p124 = pneg %p123
      $region14: #{tpu_custom_call.1} parent=5 // pred_check_branch
        %126 = sbr.rel (%p124) target = $region16
      $region15: #{tpu_custom_call.1} parent=5 // pred_region
        // Predicated region
        $region17: #{tpu_custom_call.1} parent=15 // pred_check
          %p127 = pneg %p48
        $region18: #{tpu_custom_call.1} parent=15 // pred_check_branch
          %129 = sbr.rel (%p127) target = $region20
        $region19: #{tpu_custom_call.1} parent=15 // pred_region
          %s130 = sand.u32 %s38, 1
          %s131 = scalar_lea.sflag [#allocation3], %s130
          %s132 = sand.u32 %s38, 1
          %s133 = smul.addr %s132, 2
          %s134 = scalar_lea.vmem [#allocation2], %s133
          %s135 = sadd.s32 %s21, %s22
          %s137 = ssub.s32 32, 32
          %138 = vsyncadd %s131, %s137
          %s139 = smul.addr %s135, 32
          %s140 = scalar_lea.hbm %s0, %s139
          %s142 = sshll.u32 %s134, 4
          %s143 = int_to_ptr.vmem [resolvable:$true] %s142
          %145 = dma.hbm_to_vmem [thread:$0]  %s140, 32, %s143, %s131
        $region20: #{tpu_custom_call.1} parent=15 // pred_fallthru
          _
        // Predicated region
        $region21: #{tpu_custom_call.1} parent=15 // pred_check
          %p146 = pneg %p76
        $region22: #{tpu_custom_call.1} parent=15 // pred_check_branch
          %148 = sbr.rel (%p146) target = $region24
        $region23: #{tpu_custom_call.1} parent=15 // pred_region
          %s149 = sand.u32 %s66, 1
          %s150 = scalar_lea.sflag [#allocation5], %s149
          %s151 = sand.u32 %s66, 1
          %s152 = smul.addr %s151, 2
          %s153 = scalar_lea.vmem [#allocation4], %s152
          %s154 = sadd.s32 %s21, %s22
          %s156 = ssub.s32 32, 32
          %157 = vsyncadd %s150, %s156
          %s158 = smul.addr %s154, 32
          %s159 = scalar_lea.hbm %s1, %s158
          %s161 = sshll.u32 %s153, 4
          %s162 = int_to_ptr.vmem [resolvable:$true] %s161
          %164 = dma.hbm_to_vmem [thread:$0]  %s159, 32, %s162, %s150
        $region24: #{tpu_custom_call.1} parent=15 // pred_fallthru
          _
      $region16: #{tpu_custom_call.1} parent=5 // pred_fallthru
        _
      %p165 = scmp.le.s32.totalorder 1, %s14
      %p166 = scmp.lt.s32.totalorder %s14, 3
      %p167 = pnand %p165, %p166
      %p168 = pneg %p167
      // Predicated region
      $region25: #{tpu_custom_call.1} parent=5 // pred_check
        _
      $region26: #{tpu_custom_call.1} parent=5 // pred_check_branch
        %170 = sbr.rel (%p167) target = $region28
      $region27: #{tpu_custom_call.1} parent=5 // pred_region
        %s171 = ssub.s32 %s14, 1
        %s172 = sand.u32 %s41, 1
        %s173 = scalar_lea.sflag [#allocation3], %s172
        %s174 = sand.u32 %s41, 1
        %s175 = smul.addr %s174, 2
        %s176 = scalar_lea.vmem [#allocation2], %s175
        // Predicated region
        $region29: #{tpu_custom_call.1} parent=27 // pred_check
          %p177 = pneg %p54
        $region30: #{tpu_custom_call.1} parent=27 // pred_check_branch
          %179 = sbr.rel (%p177) target = $region32
        $region31: #{tpu_custom_call.1} parent=27 // pred_region
          %180 = dma.done %s173, 32
        $region32: #{tpu_custom_call.1} parent=27 // pred_fallthru
          _
        %s181 = sand.u32 %s69, 1
        %s182 = scalar_lea.sflag [#allocation5], %s181
        %s183 = sand.u32 %s69, 1
        %s184 = smul.addr %s183, 2
        %s185 = scalar_lea.vmem [#allocation4], %s184
        // Predicated region
        $region33: #{tpu_custom_call.1} parent=27 // pred_check
          %p186 = pneg %p82
        $region34: #{tpu_custom_call.1} parent=27 // pred_check_branch
          %188 = sbr.rel (%p186) target = $region36
        $region35: #{tpu_custom_call.1} parent=27 // pred_region
          %189 = dma.done %s182, 32
        $region36: #{tpu_custom_call.1} parent=27 // pred_fallthru
          _
        %s190 = sand.u32 %s41, 1
        %s191 = scalar_lea.sflag [#allocation3], %s190
        %s192 = sand.u32 %s41, 1
        %s193 = smul.addr %s192, 2
        %s194 = scalar_lea.vmem [#allocation2], %s193
        %p195 = pneg %p54
        %p196 = pneg %p51
        %s197 = sand.u32 %s69, 1
        %s198 = scalar_lea.sflag [#allocation5], %s197
        %s199 = sand.u32 %s69, 1
        %s200 = smul.addr %s199, 2
        %s201 = scalar_lea.vmem [#allocation4], %s200
        %p202 = pneg %p82
        %p203 = pneg %p79
        %p204 = pneg %p108
        %p205 = pneg %p105
        %p206 = scmp.lt.s32.totalorder %s23, 1
        %s207 = scalar_select %p206, %s23, 1
        %s208 = smul.addr %s207, 4
        %s209 = scalar_lea.vmem %s2, %s208
        %s210 = sadd.s32 %s23, %s24
        %s211 = sadd.s32 %s23, %s24
        %p212 = scmp.lt.s32.totalorder %s23, 1
        %s213 = scalar_select %p212, %s23, 1
        %s214 = smul.addr %s213, 4
        %s215 = scalar_lea.vmem %s2, %s214
        %p216 = scmp.eq.s32.totalorder %s24, 0
        // Predicated region
        $region37: #{tpu_custom_call.1} parent=27 // pred_check
          %p217 = pneg %p216
        $region38: #{tpu_custom_call.1} parent=27 // pred_check_branch
          %219 = sbr.rel (%p217) target = $region40
        $region39: #{tpu_custom_call.1} parent=27 // pred_region
          %vm220 = vcmask 11264
          %221 = vst.msk [vmem:[%s215] sm:$0xf] %vm220, 0.0
        $region40: #{tpu_custom_call.1} parent=27 // pred_fallthru
          _
        %v222 = vld [vmem:[%s185] sm:$0x3]
        %v223 = vunpack.c.l.bf16 %v222
        %v224 = vld [vmem:[%s176] sm:$0x1]
        %v225 = vlaneseq
        %v226 = vshrl.u32 %v225, 7
        %v227 = vsub.s32 0, %v226
        %v228 = vrot.slane %v224, %v227
        %v229 = vmul.f32 %v228, %v223
        %vm230 = vcmask 1043456
        %v231 = vsel %vm230, %v229, 0.0
        %232 = vadd.xlane.f32.xlu0 %v231
        %v233 = vpop.xlane.xlu0 %232
        %v234 = vld [vmem:[%s176 + $0x1] sm:$0x1]
        %v235 = vlaneseq
        %v236 = vshrl.u32 %v235, 7
        %v237 = vsub.s32 0, %v236
        %v238 = vrot.slane %v234, %v237
        %v239 = vmul.f32 %v238, %v223
        %v240 = vsel %vm230, %v239, 0.0
        %241 = vadd.xlane.f32.xlu0 %v240
        %v242 = vpop.xlane.xlu0 %241
        %v243 = vld [vmem:[%s215] sm:$0xf]
        %vm244 = vcmask 7168
        %v245 = vsel %vm244, %v233, %v242
        %v246 = vadd.f32 %v243, %v245
        %vm247 = vcmask 11264
        %248 = vst.msk [vmem:[%s215] sm:$0xf] %vm247, %v246
        %p249 = scmp.lt.s32.totalorder %s23, 1
        %s250 = scalar_select %p249, %s23, 1
        %s251 = smul.addr %s250, 4
        %s252 = scalar_lea.vmem %s2, %s251
        // Predicated region
        $region41: #{tpu_custom_call.1} parent=27 // pred_check
          %p253 = pneg %p105
        $region42: #{tpu_custom_call.1} parent=27 // pred_check_branch
          %255 = sbr.rel (%p253) target = $region44
        $region43: #{tpu_custom_call.1} parent=27 // pred_region
          _
        $region44: #{tpu_custom_call.1} parent=27 // pred_fallthru
          _
      $region28: #{tpu_custom_call.1} parent=5 // pred_fallthru
        _
      %p256 = scmp.le.s32.totalorder 2, %s14
      // Predicated region
      $region45: #{tpu_custom_call.1} parent=5 // pred_check
        %p257 = pneg %p256
      $region46: #{tpu_custom_call.1} parent=5 // pred_check_branch
        %259 = sbr.rel (%p257) target = $region48
      $region47: #{tpu_custom_call.1} parent=5 // pred_region
        %s260 = ssub.s32 %s14, 2
        // Predicated region
        $region49: #{tpu_custom_call.1} parent=47 // pred_check
          %p261 = pneg %p111
        $region50: #{tpu_custom_call.1} parent=47 // pred_check_branch
          %263 = sbr.rel (%p261) target = $region52
        $region51: #{tpu_custom_call.1} parent=47 // pred_region
          %p264 = scmp.lt.s32.totalorder %s25, 1
          %s265 = scalar_select %p264, %s25, 1
          %s266 = smul.addr %s265, 4
          %s267 = scalar_lea.vmem %s2, %s266
        $region52: #{tpu_custom_call.1} parent=47 // pred_fallthru
          _
      $region48: #{tpu_custom_call.1} parent=5 // pred_fallthru
        _
    $region6: #{tpu_custom_call.1} parent=1 // loop_footer
      %s18 = sadd.s32 1, %s14
    $region7: #{tpu_custom_call.1} parent=1 // loop_footer_branch
      %13 = sbr.rel target = $region3
    $region8: #{tpu_custom_call.1} parent=1 // loop_exit
      _
    %268 = vsyncpa [#allocation3], 1
    %s269 = scalar_lea.sflag [#allocation3], 1
    %270 = vsyncpa %s269, 1
    %271 = vsyncpa [#allocation5], 1
    %s272 = scalar_lea.sflag [#allocation5], 1
    %273 = vsyncpa %s272, 1

</llo_original>
